<compile_context>
chip_gen: v6e
topology: v6e:2x2x1
jax: 0.10.0
libtpu: 0.0.40
codegen_flags: <defaults>
</compile_context>

<pallas_src>
import math
import numpy as np
import jax
import jax.numpy as jnp
from jax.experimental import pallas as pl
from jax.experimental.pallas import tpu as pltpu


def _round_up(x, m):
    return (x + m - 1) // m * m


# ----------------------------------------------------------------------------
# Tiled matmul kernel (MXU), bf16 inputs / f32 accumulation.
# Grid = (N tiles, M tiles): the DFT matrix (B operand) block index depends only
# on the outer axis, so it is fetched once per N tile and stays resident across
# the inner M loop.  Both axes 'parallel' (megacore / dual-TC friendly).
# ----------------------------------------------------------------------------
def _matmul_kernel(a_ref, b_ref, o_ref):
    o_ref[...] = jnp.dot(a_ref[...], b_ref[...], preferred_element_type=jnp.float32)


def matmul_pallas(a, b, tn=256):
    """C = A @ B.  Operands are cast to bf16 (MXU-native), output is f32."""
    M, K = a.shape
    K2, N = b.shape
    assert K == K2
    a = a.astype(jnp.bfloat16)
    b = b.astype(jnp.bfloat16)
    tm = min(_round_up(M, 16), 128)          # bf16 sublane packing -> multiples of 16
    Mp = _round_up(M, tm)
    Np = _round_up(N, tn)
    a_p = jnp.pad(a, ((0, Mp - M), (0, 0)))
    b_p = jnp.pad(b, ((0, 0), (0, Np - N)))
    out = pl.pallas_call(
        _matmul_kernel,
        out_shape=jax.ShapeDtypeStruct((Mp, Np), jnp.float32),
        grid=(Np // tn, Mp // tm),
        in_specs=[
            pl.BlockSpec((tm, K), lambda j, i: (i, 0)),   # A: changes with inner axis
            pl.BlockSpec((K, tn), lambda j, i: (0, j)),   # B: invariant across inner axis
        ],
        out_specs=pl.BlockSpec((tm, tn), lambda j, i: (i, j)),
        compiler_params=pltpu.CompilerParams(
            dimension_semantics=("parallel", "parallel")),
    )(a_p, b_p)
    return out[:M, :N]


# ----------------------------------------------------------------------------
# Phase vocoder: ONE kernel invocation.
#   * norm/angle of the (zero-padded) spectrogram are VMEM-resident inputs,
#   * the stretched-frame source indices and interpolation weights live in SMEM,
#   * a lax.fori_loop carries the phase accumulator,
#   * re/im of the stretched spectrogram are emitted directly (cos/sin on EUP).
# Matches torchaudio.functional.phase_vocoder.
# ----------------------------------------------------------------------------
def _phase_vocoder_kernel(idx_ref, alpha_ref, norm_ref, ang_ref, padv_ref,
                          sre_ref, sim_ref):
    t_total = sre_ref.shape[0]
    padv = padv_ref[...]                       # (1, Fp)
    two_pi = 2.0 * math.pi

    def body(t, acc):
        i = idx_ref[t]
        alpha = alpha_ref[t]
        n0 = norm_ref[i]                       # (BC, Fp)
        n1 = norm_ref[i + 1]
        a0 = ang_ref[i]
        a1 = ang_ref[i + 1]
        mag = alpha * n1 + (1.0 - alpha) * n0
        sre_ref[t] = mag * jnp.cos(acc)
        sim_ref[t] = mag * jnp.sin(acc)
        dphi = a1 - a0 - padv
        dphi = dphi - two_pi * jnp.floor(dphi / two_pi + 0.5)
        return acc + dphi + padv

    # phase_acc[0] = angle(frame 0)  (time_steps[0] == 0, as in torchaudio)
    jax.lax.fori_loop(0, t_total, body, ang_ref[0])


def phase_vocoder_pallas(norm_t, ang_t, phadv, idx, alphas):
    """norm_t / ang_t: (T_src+2, BC, Fp) time-major magnitude / angle of the complex
    STFT (zero-padded by 2 frames).  phadv: (1, Fp).  idx (int32) / alphas (f32):
    (T_pad,) padded to a static bucket.  Returns (sre, sim), each (T_pad, BC, Fp)."""
    _, BC, Fp = norm_t.shape
    T_pad = int(idx.shape[0])
    vmem = pltpu.MemorySpace.VMEM
    smem = pltpu.MemorySpace.SMEM
    return pl.pallas_call(
        _phase_vocoder_kernel,
        out_shape=(jax.ShapeDtypeStruct((T_pad, BC, Fp), jnp.float32),
                   jax.ShapeDtypeStruct((T_pad, BC, Fp), jnp.float32)),
        in_specs=[
            pl.BlockSpec(memory_space=smem),   # idx
            pl.BlockSpec(memory_space=smem),   # alphas
            pl.BlockSpec(memory_space=vmem),   # |X|
            pl.BlockSpec(memory_space=vmem),   # angle(X)
            pl.BlockSpec(memory_space=vmem),   # phase advance
        ],
        out_specs=(pl.BlockSpec(memory_space=vmem),
                   pl.BlockSpec(memory_space=vmem)),
    )(idx, alphas, norm_t, ang_t, phadv)


# ----------------------------------------------------------------------------
# Overlap-add kernel (hop == n_fft // 2) with fused 1/envelope multiply.
# Single invocation: frames resident in VMEM, output written per channel in
# (BC, n_blk, hop) layout (lane-dense 1024-wide stores, no HBM transpose).
# ----------------------------------------------------------------------------
def _overlap_add_kernel(frames_ref, inv_env_ref, out_ref):
    BC, n_blk, hop = out_ref.shape
    T = frames_ref.shape[0]
    n_fft = 2 * hop
    inv_env = inv_env_ref[...]                               # (T+1, hop)
    for c in range(BC):                                      # BC is small & static
        a = frames_ref[:, c * n_fft:c * n_fft + hop]         # first halves   (T, hop)
        b = frames_ref[:, c * n_fft + hop:(c + 1) * n_fft]   # second halves  (T, hop)
        out_ref[c, 0:1, :] = a[0:1] * inv_env[0:1]
        out_ref[c, 1:T, :] = (a[1:] + b[:T - 1]) * inv_env[1:T]
        out_ref[c, T:T + 1, :] = b[T - 1:T] * inv_env[T:T + 1]


def overlap_add_pallas(frames, inv_env):
    """frames: (T, BC, n_fft) windowed synthesis frames, hop == n_fft // 2.
    inv_env: (T+1, hop) reciprocal hann^2 OLA envelope (fused in-kernel).
    Returns (BC, T+1, hop); reshape to (BC, (T+1)*hop) is contiguous / free."""
    T, BC, n_fft = frames.shape
    hop = n_fft // 2
    vmem = pltpu.MemorySpace.VMEM
    return pl.pallas_call(
        _overlap_add_kernel,
        out_shape=jax.ShapeDtypeStruct((BC, T + 1, hop), jnp.float32),
        in_specs=[pl.BlockSpec(memory_space=vmem),
                  pl.BlockSpec(memory_space=vmem)],
        out_specs=pl.BlockSpec(memory_space=vmem),
    )(frames.reshape(T, BC * n_fft), inv_env)


# ----------------------------------------------------------------------------
# The module.
# ----------------------------------------------------------------------------
class TimeStretchPallas:
    """JAX/Pallas port of the PyTorch TimeStretch module (STFT -> phase vocoder -> iSTFT)."""

    def __init__(self, n_freq: int = 1025, n_fft: int = 2048):
        assert n_freq == n_fft // 2 + 1
        self.n_fft = n_fft
        self.hop = n_fft // 2
        self.n_freq = n_freq
        self.f_pad = _round_up(n_freq, 128)          # lane-dense frequency axis

        # periodic Hann window (torch.hann_window default)
        n = np.arange(n_fft)
        window = 0.5 * (1.0 - np.cos(2.0 * np.pi * n / n_fft))
        self.window = window.astype(np.float32)

        # windowed forward DFT:   frames @ fwd -> [Re | Im] (onesided rfft), bf16 storage
        k = n[:, None].astype(np.float64)
        f = np.arange(n_freq)[None, :].astype(np.float64)
        ang = 2.0 * np.pi * k * f / n_fft
        fwd = np.zeros((n_fft, 2 * self.f_pad), np.float32)
        fwd[:, :n_freq] = np.cos(ang) * window[:, None]
        fwd[:, self.f_pad:self.f_pad + n_freq] = -np.sin(ang) * window[:, None]
        self.dft_fwd = jnp.asarray(fwd).astype(jnp.bfloat16)

        # windowed inverse DFT:   [Re | Im] @ inv -> windowed synthesis frame, bf16 storage
        w = np.full((n_freq, 1), 2.0)
        w[0, 0] = 1.0
        w[-1, 0] = 1.0
        inv = np.zeros((2 * self.f_pad, n_fft), np.float32)
        inv[:n_freq] = (w * np.cos(ang.T) / n_fft) * window[None, :]
        inv[self.f_pad:self.f_pad + n_freq] = (-w * np.sin(ang.T) / n_fft) * window[None, :]
        self.dft_inv = jnp.asarray(inv).astype(jnp.bfloat16)

        # phase_advance = linspace(0, pi * hop, n_freq), zero-padded to f_pad lanes
        padv = np.zeros((1, self.f_pad), np.float32)
        padv[0, :n_freq] = np.linspace(0.0, math.pi * self.hop, n_freq)
        self.phase_advance = jnp.asarray(padv)

        self._inv_env_cache = {}

    # static upper bound on the stretched frame count for rate in [0.9, 1.1]
    def _t_out_bucket(self, t_src):
        return int(math.ceil(t_src / 0.9)) + 1

    def _inv_envelope(self, t_frames):
        if t_frames not in self._inv_env_cache:
            L = (t_frames + 1) * self.hop
            env = np.zeros(L, np.float64)
            wsq = (self.window.astype(np.float64)) ** 2
            for t in range(t_frames):
                env[t * self.hop:t * self.hop + self.n_fft] += wsq
            inv = np.where(env > 1e-11, 1.0 / np.maximum(env, 1e-11), 1.0)
            self._inv_env_cache[t_frames] = jnp.asarray(
                inv.astype(np.float32).reshape(t_frames + 1, self.hop))
        return self._inv_env_cache[t_frames]

    # ---------------- STFT (Spectrogram, power=None) ----------------
    def _stft(self, x):
        BC, T = x.shape
        pad = self.n_fft // 2
        xp = jnp.pad(x, ((0, 0), (pad, pad)), mode="reflect")
        n_frames = 1 + (xp.shape[1] - self.n_fft) // self.hop
        # TODO(synk): the 50%-overlap framing could be folded into the matmul's
        # BlockSpec (element-offset index map) to avoid this XLA gather copy.
        gather_idx = (np.arange(n_frames)[:, None] * self.hop
                      + np.arange(self.n_fft)[None, :])
        frames = xp[:, gather_idx].reshape(BC * n_frames, self.n_fft)
        spec = matmul_pallas(frames, self.dft_fwd)                  # (BC*n_frames, 2*f_pad)
        spec = spec.reshape(BC, n_frames, 2 * self.f_pad)
        return spec[..., :self.f_pad], spec[..., self.f_pad:]

    # ---------------- phase vocoder ----------------
    def _phase_vocoder(self, re, im, rate):
        BC, T_src, Fp = re.shape
        time_steps = np.arange(0, T_src, rate)                      # host, like torch.arange
        T_out = int(time_steps.shape[0])
        T_pad = max(self._t_out_bucket(T_src), T_out)               # static bucket
        idx_np = np.full(T_pad, int(time_steps[-1]), np.int32)      # clamp padded tail
        idx_np[:T_out] = time_steps.astype(np.int32)
        alpha_np = np.zeros(T_pad, np.float32)
        alpha_np[:T_out] = (time_steps % 1.0).astype(np.float32)

        re_t = jnp.pad(re, ((0, 0), (0, 2), (0, 0))).transpose(1, 0, 2)
        im_t = jnp.pad(im, ((0, 0), (0, 2), (0, 0))).transpose(1, 0, 2)
        norm_t = jnp.sqrt(re_t * re_t + im_t * im_t)
        # TODO(synk): atan2 kept in XLA on this tiny spectrogram until Mosaic atan2
        # coverage is confirmed; cos/sin of the phase accumulator are done in-kernel.
        ang_t = jnp.arctan2(im_t, re_t)

        sre, sim = phase_vocoder_pallas(norm_t, ang_t, self.phase_advance,
                                        jnp.asarray(idx_np), jnp.asarray(alpha_np))
        return sre, sim, T_out                                      # (T_pad, BC, f_pad)

    # ---------------- iSTFT ----------------
    def _istft(self, re_t, im_t):
        """re_t/im_t: (T_frames, BC, f_pad).  Returns (BC, hop*(T_frames-1)); only the
        first hop*(T_valid-1) samples are meaningful when T_frames is a padded bucket."""
        T_frames, BC, Fp = re_t.shape
        spec_ri = jnp.concatenate([re_t, im_t], axis=-1).reshape(T_frames * BC, 2 * Fp)
        frames = matmul_pallas(spec_ri, self.dft_inv)               # windowed ifft frames
        frames = frames.reshape(T_frames, BC, self.n_fft)
        blocks = overlap_add_pallas(frames, self._inv_envelope(T_frames))
        y_full = blocks.reshape(BC, (T_frames + 1) * self.hop)      # contiguous, free
        pad = self.n_fft // 2
        return y_full[:, pad:T_frames * self.hop]                   # center trim

    # ---------------- forward ----------------
    def __call__(self, wav, rate=1, St=True):
        B, C, T = wav.shape
        re, im = self._stft(wav.reshape(B * C, T).astype(jnp.float32))
        if St:
            rate = float(np.random.uniform(0.9, 1.1))               # host RNG, as in PyTorch
            sre, sim, T_out = self._phase_vocoder(re, im, rate)
            y = self._istft(sre, sim)                               # static-shaped, padded tail
            L_valid = self.hop * (T_out - 1)
            # tile-and-trim back to the input length (torch: cat((y, y))[..., :T])
            # TODO(synk): if T > 2*L_valid torch returns a shorter tensor; here we wrap.
            gather = jnp.asarray((np.arange(T) % max(L_valid, 1)).astype(np.int32))
            return jnp.take(y, gather, axis=1).reshape(B, C, T)
        if rate == 1:
            y = self._istft(re.transpose(1, 0, 2), im.transpose(1, 0, 2))
            L = y.shape[1]
            y = y[:, :T] if L >= T else jnp.pad(y, ((0, 0), (0, T - L)))
            return y.reshape(B, C, T)
        sre, sim, T_out = self._phase_vocoder(re, im, float(rate))
        y = self._istft(sre, sim)[:, :self.hop * (T_out - 1)]
        return y.reshape(B, C, -1)


if __name__ == "__main__":
    np.random.seed(0)                       # host RNG for the random stretch rate
    keys = jax.random.split(jax.random.PRNGKey(0), 8)

    # ---- matmul kernel check (bf16 operands, f32 accumulation) ----------------
    a = jax.random.normal(keys[0], (18, 256), jnp.float32)
    b = jax.random.normal(keys[1], (256, 384), jnp.float32)
    got = matmul_pallas(a, b)
    ref = jnp.dot(a.astype(jnp.bfloat16).astype(jnp.float32),
                  b.astype(jnp.bfloat16).astype(jnp.float32),
                  precision=jax.lax.Precision.HIGHEST)
    rel = float(jnp.linalg.norm(got - ref) / jnp.linalg.norm(ref))
    assert rel < 1e-3, f"matmul kernel mismatch: rel={rel}"

    # ---- overlap-add (+ fused envelope) kernel check ---------------------------
    Tt, BCt, nfft_t = 5, 2, 2048
    hop_t = nfft_t // 2
    fr = jax.random.normal(keys[2], (Tt, BCt, nfft_t), jnp.float32)
    inv_env_t = jax.random.uniform(keys[6], (Tt + 1, hop_t), jnp.float32, 0.5, 2.0)
    got = overlap_add_pallas(fr, inv_env_t)
    acc = jnp.zeros((BCt, (Tt + 1) * hop_t), jnp.float32)
    for t in range(Tt):
        acc = acc.at[:, t * hop_t:t * hop_t + nfft_t].add(fr[t])
    ref = acc.reshape(BCt, Tt + 1, hop_t) * inv_env_t[None]
    assert jnp.allclose(got, ref, atol=1e-5), "overlap-add kernel mismatch"

    # ---- phase-vocoder kernel check vs pure-JAX reference ----------------------
    Tn, BCv, Fpv = 6, 2, 256
    norm = jnp.abs(jax.random.normal(keys[3], (Tn + 2, BCv, Fpv), jnp.float32))
    angs = jax.random.uniform(keys[4], (Tn + 2, BCv, Fpv), jnp.float32, -3.0, 3.0)
    padv = jnp.linspace(0.0, 2.5, Fpv, dtype=jnp.float32)[None, :]
    steps = np.arange(0, Tn, 0.85)
    T_out = len(steps)
    T_padv = T_out + 3                                    # exercise the padded tail
    idx_np = np.full(T_padv, int(steps[-1]), np.int32)
    idx_np[:T_out] = steps.astype(np.int32)
    al_np = np.zeros(T_padv, np.float32)
    al_np[:T_out] = (steps % 1.0).astype(np.float32)
    sre, sim = phase_vocoder_pallas(norm, angs, padv,
                                    jnp.asarray(idx_np), jnp.asarray(al_np))
    idx = steps.astype(np.int64)
    alphas = jnp.asarray((steps % 1.0).astype(np.float32))[:, None, None]
    n0, n1, a0, a1 = norm[idx], norm[idx + 1], angs[idx], angs[idx + 1]
    mag_ref = alphas * n1 + (1 - alphas) * n0
    d = a1 - a0 - padv
    d = d - 2 * np.pi * jnp.floor(d / (2 * np.pi) + 0.5)
    inc = d + padv
    acc_ref = angs[0][None] + jnp.concatenate(
        [jnp.zeros_like(inc[:1]), jnp.cumsum(inc[:-1], axis=0)], axis=0)
    assert jnp.allclose(sre[:T_out], mag_ref * jnp.cos(acc_ref), atol=1e-3), "vocoder re mismatch"
    assert jnp.allclose(sim[:T_out], mag_ref * jnp.sin(acc_ref), atol=1e-3), "vocoder im mismatch"

    # ---- full TimeStretch forward (default St=True path) -----------------------
    B, C, T = 2, 1, 8192
    wav = 0.1 * jax.random.normal(keys[5], (B, C, T), jnp.float32)
    module = TimeStretchPallas(n_freq=1025, n_fft=2048)
    out = jax.block_until_ready(module(wav, St=True))
    assert out.shape == (B, C, T), out.shape
    assert bool(jnp.all(jnp.isfinite(out)))
    print("KERNEL_OK")
</pallas_src>

<mosaic_0001>
module attributes {stable_mosaic.version = 11 : i64} {
  func.func @_matmul_kernel(%arg0: i32, %arg1: i32, %arg2: memref<32x256xbf16, #tpu.memory_space<vmem>>, %arg3: memref<256x256xbf16, #tpu.memory_space<vmem>>, %arg4: memref<32x256xf32, #tpu.memory_space<vmem>>) attributes {dimension_semantics = [#tpu.dimension_semantics<parallel>, #tpu.dimension_semantics<parallel>], iteration_bounds = array<i64: 2, 1>, scalar_prefetch = 0 : i64, scratch_operands = 0 : i64, tpu.core_type = #tpu.core_type<tc>, window_params = [{transform_indices = @transform_0, window_bounds = array<i64: 32, 256>}, {transform_indices = @transform_1, window_bounds = array<i64: 256, 256>}, {transform_indices = @transform_2, window_bounds = array<i64: 32, 256>}]} {
    %c0 = arith.constant 0 : index
    %c0_0 = arith.constant 0 : index
    %0 = vector.load %arg2[%c0, %c0_0] : memref<32x256xbf16, #tpu.memory_space<vmem>>, vector<32x256xbf16>
    %c0_1 = arith.constant 0 : index
    %c0_2 = arith.constant 0 : index
    %1 = vector.load %arg3[%c0_1, %c0_2] : memref<256x256xbf16, #tpu.memory_space<vmem>>, vector<256x256xbf16>
    %cst = arith.constant dense<0.000000e+00> : vector<32x256xf32>
    %2 = tpu.matmul %0, %1, %cst {dimension_numbers = #tpu.dot_dimension_numbers<[1], [0], [0], [1], [0, 0, 1, 1], [], []>} : vector<32x256xbf16>, vector<256x256xbf16>, vector<32x256xf32> -> vector<32x256xf32>
    %c0_3 = arith.constant 0 : index
    %c0_4 = arith.constant 0 : index
    %3 = vector.load %arg4[%c0_3, %c0_4] : memref<32x256xf32, #tpu.memory_space<vmem>>, vector<32x256xf32>
    tpu.vector_store %arg4[%c0_3, %c0_4], %2 {strides = array<i32>} : memref<32x256xf32, #tpu.memory_space<vmem>>, vector<32x256xf32>,
    return
  }
  func.func @transform_0(%arg0: i32, %arg1: i32) -> (i32, i32) {
    %c0_i32 = arith.constant 0 : i32
    %c0_i32_0 = arith.constant 0 : i32
    return %arg1, %c0_i32 : i32, i32
  }
  func.func @transform_1(%arg0: i32, %arg1: i32) -> (i32, i32) {
    %c0_i32 = arith.constant 0 : i32
    %c0_i32_0 = arith.constant 0 : i32
    return %c0_i32, %arg0 : i32, i32
  }
  func.func @transform_2(%arg0: i32, %arg1: i32) -> (i32, i32) {
    %c0_i32 = arith.constant 0 : i32
    return %arg1, %arg0 : i32, i32
  }
}

</mosaic_0001>

<llo_original>
// kernel: tpu_custom_call.1
$region0: #{tpu_custom_call.1}
  #allocation0 [shape = 'u32[]', space=smem, size = 0x4, offset = 0x4, fixed_abs, tag = 'smem constant byte address 0x4 - core index']
  #allocation1 [shape = 'u32[144,128]{1,0:T(1,128)}', space=vmem, size = 0x12000, scoped, tag = 'internal scratch']
  %s0 = inlined_call_operand.hbm [shape: bf16[32,256], index: 0, kind: input, shape index: {}]
  %s1 = inlined_call_operand.hbm [shape: bf16[256,512], index: 1, kind: input, shape index: {}]
  %s2 = inlined_call_operand.hbm [shape: f32[32,512], index: 2, kind: output, shape index: {}]
  %s3 = sld [smem:[#allocation0]]
  $region49: #{tpu_custom_call.1} parent=0
    _
  %s5 = ssub.s32 1, %s3
  %s6 = scalar_select 0, %s5, %s3
  $region1: #{tpu_custom_call.1} parent=0
    #allocation2 [shape = 'u8[16384]{0}', space=vmem, size = 0x4000, scoped, tag = 'input window, operand 0, single buffered']
    #allocation3 [shape = 's32[2]{0}', space=sflag, size = 0x8, scoped, tag = 'scoped memory for tpu_custom_call.1']
    #allocation4 [shape = 's32[2]{0}', space=sflag, size = 0x8, scoped, tag = 'scoped memory for tpu_custom_call.1']
    #allocation5 [shape = 'u8[262144]{0}', space=vmem, size = 0x40000, scoped, tag = 'input window, operand 1']
    #allocation6 [shape = 's32[2]{0}', space=sflag, size = 0x8, scoped, tag = 'scoped memory for tpu_custom_call.1']
    #allocation7 [shape = 'u8[65536]{0}', space=vmem, size = 0x10000, scoped, tag = 'output window, operand 0']
    %7 = vsyncpa [#allocation3], 0
    %8 = vsyncpa [#allocation6], 0
    %s9 = scalar_lea.sflag [#allocation6], 1
    %10 = vsyncpa %s9, 0
    %11 = vsyncpa [#allocation4], 0
    %s12 = scalar_lea.sflag [#allocation4], 1
    %13 = vsyncpa %s12, 0
    loop: start=0, step=1, limit=4
    $region2: #{tpu_custom_call.1} parent=1 // loop_pre_header
      _
    $region3: #{tpu_custom_call.1} parent=1 // loop_header
      %s15 = sphi 0, %s19
      %p16 = scmp.ge.s32.totalorder %s15, 4
      %s22 = sphi 0, %s34
      %s23 = sphi 0, %s30
      %s24 = sphi 0, %s22
      %s25 = sphi 0, %s23
      %s26 = sphi 0, %s24
      %s27 = sphi 0, %s25
      %s37 = sphi 0, %s39
      %s40 = sphi 0, %s37
      %s41 = sphi 0, %s40
      %s57 = sphi 0, %s41
      %s63 = sphi 0, %s65
      %s66 = sphi 0, %s63
      %s67 = sphi 0, %s66
      %s83 = sphi 0, %s67
      %s91 = sphi 0, %s93
      %s94 = sphi 0, %s91
      %s95 = sphi 0, %s94
      %s111 = sphi 0, %s95
    $region4: #{tpu_custom_call.1} parent=1 // loop_header_branch
      %18 = sbr.rel (%p16) target = $region8
    $region5: #{tpu_custom_call.1} parent=1 // loop_body
      %s20 = ssub.s32 %s15, 1
      %s21 = ssub.s32 %s15, 2
      %s28 = sadd.s32 1, %s23
      %p29 = scmp.ge.s32.totalorder %s28, 1
      %s30 = scalar_select %p29, 0, %s28
      %s31 = sadd.s32 1, %s22
      %s32 = scalar_select %p29, %s31, %s22
      %p33 = scmp.ge.s32.totalorder %s32, 2
      %s34 = scalar_select %p33, 0, %s32
      %s35 = ssub.s32 %s23, %s30
      %p36 = scmp.eq.s32.totalorder %s35, 0
      %s38 = sadd.s32 %s37, 1
      %s39 = scalar_select %p36, %s37, %s38
      %p42 = pneg %p36
      %p43 = scmp.eq.s32.totalorder %s15, 1
      %p44 = por %p42, %p43
      %p45 = scmp.ne.s32.totalorder %s37, %s40
      %p46 = scmp.eq.s32.totalorder %s15, 0
      %p47 = por %p45, %p46
      %p48 = scmp.ne.s32.totalorder %s37, %s40
      %p49 = scmp.eq.s32.totalorder %s20, 1
      %p50 = por %p48, %p49
      %p51 = scmp.ne.s32.totalorder %s40, %s41
      %p52 = scmp.eq.s32.totalorder %s20, 0
      %p53 = por %p51, %p52
      %p54 = scmp.ne.s32.totalorder %s40, %s41
      %p55 = scmp.eq.s32.totalorder %s21, 1
      %p56 = por %p54, %p55
      %p58 = scmp.ne.s32.totalorder %s41, %s57
      %p59 = scmp.eq.s32.totalorder %s21, 0
      %p60 = por %p58, %p59
      %s61 = ssub.s32 %s22, %s34
      %p62 = scmp.eq.s32.totalorder %s61, 0
      %s64 = sadd.s32 %s63, 1
      %s65 = scalar_select %p62, %s63, %s64
      %p68 = pneg %p62
      %p69 = scmp.eq.s32.totalorder %s15, 1
      %p70 = por %p68, %p69
      %p71 = scmp.ne.s32.totalorder %s63, %s66
      %p72 = scmp.eq.s32.totalorder %s15, 0
      %p73 = por %p71, %p72
      %p74 = scmp.ne.s32.totalorder %s63, %s66
      %p75 = scmp.eq.s32.totalorder %s20, 1
      %p76 = por %p74, %p75
      %p77 = scmp.ne.s32.totalorder %s66, %s67
      %p78 = scmp.eq.s32.totalorder %s20, 0
      %p79 = por %p77, %p78
      %p80 = scmp.ne.s32.totalorder %s66, %s67
      %p81 = scmp.eq.s32.totalorder %s21, 1
      %p82 = por %p80, %p81
      %p84 = scmp.ne.s32.totalorder %s67, %s83
      %p85 = scmp.eq.s32.totalorder %s21, 0
      %p86 = por %p84, %p85
      %s87 = ssub.s32 %s23, %s30
      %s88 = ssub.s32 %s22, %s34
      %s89 = sor.u32 %s87, %s88
      %p90 = scmp.eq.s32.totalorder %s89, 0
      %s92 = sadd.s32 %s91, 1
      %s93 = scalar_select %p90, %s91, %s92
      %p96 = pneg %p90
      %p97 = scmp.eq.s32.totalorder %s15, 1
      %p98 = por %p96, %p97
      %p99 = scmp.ne.s32.totalorder %s91, %s94
      %p100 = scmp.eq.s32.totalorder %s15, 0
      %p101 = por %p99, %p100
      %p102 = scmp.ne.s32.totalorder %s91, %s94
      %p103 = scmp.eq.s32.totalorder %s20, 1
      %p104 = por %p102, %p103
      %p105 = scmp.ne.s32.totalorder %s94, %s95
      %p106 = scmp.eq.s32.totalorder %s20, 0
      %p107 = por %p105, %p106
      %p108 = scmp.ne.s32.totalorder %s94, %s95
      %p109 = scmp.eq.s32.totalorder %s21, 1
      %p110 = por %p108, %p109
      %p112 = scmp.ne.s32.totalorder %s95, %s111
      %p113 = scmp.eq.s32.totalorder %s21, 0
      %p114 = por %p112, %p113
      %p115 = scmp.le.s32.totalorder 1, %s15
      %p116 = scmp.lt.s32.totalorder %s15, 3
      %p117 = pnand %p115, %p116
      %p118 = pneg %p117
      // Predicated region
      $region9: #{tpu_custom_call.1} parent=5 // pred_check
        _
      $region10: #{tpu_custom_call.1} parent=5 // pred_check_branch
        %120 = sbr.rel (%p117) target = $region12
      $region11: #{tpu_custom_call.1} parent=5 // pred_region
        %s121 = ssub.s32 %s15, 1
        // Predicated region
        $region13: #{tpu_custom_call.1} parent=11 // pred_check
          %p122 = pneg %p53
        $region14: #{tpu_custom_call.1} parent=11 // pred_check_branch
          %124 = sbr.rel (%p122) target = $region16
        $region15: #{tpu_custom_call.1} parent=11 // pred_region
          %s125 = smul.u32 4, %s25
          %s127 = ssub.s32 512, 512
          %128 = vsyncadd [#allocation3], %s127
          %s129 = smul.addr %s125, 2
          %s130 = smul.addr %s129, 64
          %s131 = scalar_lea.hbm %s0, %s130
          %s132 = sshll.u32 [#allocation2], 4
          %s133 = int_to_ptr.vmem [resolvable:$true] %s132
          %138 = dma.hbm_to_vmem [thread:$0]  %s131, 512, %s133, [#allocation3], 128, 128, 8
        $region16: #{tpu_custom_call.1} parent=11 // pred_fallthru
          _
      $region12: #{tpu_custom_call.1} parent=5 // pred_fallthru
        _
      %p139 = scmp.lt.s32.totalorder %s15, 2
      // Predicated region
      $region17: #{tpu_custom_call.1} parent=5 // pred_check
        %p140 = pneg %p139
      $region18: #{tpu_custom_call.1} parent=5 // pred_check_branch
        %142 = sbr.rel (%p140) target = $region20
      $region19: #{tpu_custom_call.1} parent=5 // pred_region
        // Predicated region
        $region21: #{tpu_custom_call.1} parent=19 // pred_check
          %p143 = pneg %p73
        $region22: #{tpu_custom_call.1} parent=19 // pred_check_branch
          %145 = sbr.rel (%p143) target = $region24
        $region23: #{tpu_custom_call.1} parent=19 // pred_region
          %s146 = sand.u32 %s63, 1
          %s147 = scalar_lea.sflag [#allocation6], %s146
          %s148 = sand.u32 %s63, 1
          %s149 = smul.addr %s148, 256
          %s150 = scalar_lea.vmem [#allocation5], %s149
          %s151 = smul.u32 2, %s22
          %s153 = ssub.s32 4096, 4096
          %154 = vsyncadd %s147, %s153
          %s155 = smul.addr %s151, 64
          %s156 = scalar_lea.hbm %s1, %s155
          %s157 = sshll.u32 %s150, 4
          %s158 = int_to_ptr.vmem [resolvable:$true] %s157
          %163 = dma.hbm_to_vmem [thread:$0]  %s156, 4096, %s158, %s147, 256, 128, 8
        $region24: #{tpu_custom_call.1} parent=19 // pred_fallthru
          _
      $region20: #{tpu_custom_call.1} parent=5 // pred_fallthru
        _
      %p164 = scmp.le.s32.totalorder 1, %s15
      %p165 = scmp.lt.s32.totalorder %s15, 3
      %p166 = pnand %p164, %p165
      %p167 = pneg %p166
      // Predicated region
      $region25: #{tpu_custom_call.1} parent=5 // pred_check
        _
      $region26: #{tpu_custom_call.1} parent=5 // pred_check_branch
        %169 = sbr.rel (%p166) target = $region28
      $region27: #{tpu_custom_call.1} parent=5 // pred_region
        %s170 = ssub.s32 %s15, 1
        // Predicated region
        $region29: #{tpu_custom_call.1} parent=27 // pred_check
          %p171 = pneg %p53
        $region30: #{tpu_custom_call.1} parent=27 // pred_check_branch
          %173 = sbr.rel (%p171) target = $region32
        $region31: #{tpu_custom_call.1} parent=27 // pred_region
          %174 = dma.done [#allocation3], 512
        $region32: #{tpu_custom_call.1} parent=27 // pred_fallthru
          _
        %s175 = sand.u32 %s66, 1
        %s176 = scalar_lea.sflag [#allocation6], %s175
        %s177 = sand.u32 %s66, 1
        %s178 = smul.addr %s177, 256
        %s179 = scalar_lea.vmem [#allocation5], %s178
        // Predicated region
        $region33: #{tpu_custom_call.1} parent=27 // pred_check
          %p180 = pneg %p79
        $region34: #{tpu_custom_call.1} parent=27 // pred_check_branch
          %182 = sbr.rel (%p180) target = $region36
        $region35: #{tpu_custom_call.1} parent=27 // pred_region
          %183 = dma.done %s176, 4096
        $region36: #{tpu_custom_call.1} parent=27 // pred_fallthru
          _
        %p184 = pneg %p53
        %p185 = pneg %p50
        %s186 = sand.u32 %s66, 1
        %s187 = scalar_lea.sflag [#allocation6], %s186
        %s188 = sand.u32 %s66, 1
        %s189 = smul.addr %s188, 256
        %s190 = scalar_lea.vmem [#allocation5], %s189
        %p191 = pneg %p79
        %p192 = pneg %p76
        %p193 = pneg %p107
        %p194 = pneg %p104
        %s195 = sand.u32 %s94, 1
        %s196 = scalar_lea.sflag [#allocation4], %s195
        %s197 = sand.u32 %s94, 1
        %s198 = smul.addr %s197, 64
        %s199 = scalar_lea.vmem [#allocation7], %s198
        %s200 = smul.u32 4, %s25
        %s201 = smul.u32 2, %s24
        %s202 = smul.u32 4, %s25
        %s203 = smul.u32 2, %s24
        %v204 = vld [vmem:[#allocation2] sm:$0xff]
        %v205 = vld [vmem:[#allocation2 + $0x8] sm:$0xff]
        %v206 = vld [vmem:[#allocation2 + $0x10] sm:$0xff]
        %v207 = vld [vmem:[#allocation2 + $0x18] sm:$0xff]
        %v208 = vld [vmem:[%s179] sm:$0xff]
        %v209 = vld [vmem:[%s179 + $0x8] sm:$0xff]
        %v210 = vld [vmem:[%s179 + $0x10] sm:$0xff]
        %v211 = vld [vmem:[%s179 + $0x18] sm:$0xff]
        %v212 = vld [vmem:[%s179 + $0x20] sm:$0xff]
        %v213 = vld [vmem:[%s179 + $0x28] sm:$0xff]
        %v214 = vld [vmem:[%s179 + $0x30] sm:$0xff]
        %v215 = vld [vmem:[%s179 + $0x38] sm:$0xff]
        %v216 = vld [vmem:[%s179 + $0x40] sm:$0xff]
        %v217 = vld [vmem:[%s179 + $0x48] sm:$0xff]
        %v218 = vld [vmem:[%s179 + $0x50] sm:$0xff]
        %v219 = vld [vmem:[%s179 + $0x58] sm:$0xff]
        %v220 = vld [vmem:[%s179 + $0x60] sm:$0xff]
        %v221 = vld [vmem:[%s179 + $0x68] sm:$0xff]
        %v222 = vld [vmem:[%s179 + $0x70] sm:$0xff]
        %v223 = vld [vmem:[%s179 + $0x78] sm:$0xff]
        %v224 = vld [vmem:[%s179 + $0x80] sm:$0xff]
        %v225 = vld [vmem:[%s179 + $0x88] sm:$0xff]
        %v226 = vld [vmem:[%s179 + $0x90] sm:$0xff]
        %v227 = vld [vmem:[%s179 + $0x98] sm:$0xff]
        %v228 = vld [vmem:[%s179 + $0xa0] sm:$0xff]
        %v229 = vld [vmem:[%s179 + $0xa8] sm:$0xff]
        %v230 = vld [vmem:[%s179 + $0xb0] sm:$0xff]
        %v231 = vld [vmem:[%s179 + $0xb8] sm:$0xff]
        %v232 = vld [vmem:[%s179 + $0xc0] sm:$0xff]
        %v233 = vld [vmem:[%s179 + $0xc8] sm:$0xff]
        %v234 = vld [vmem:[%s179 + $0xd0] sm:$0xff]
        %v235 = vld [vmem:[%s179 + $0xd8] sm:$0xff]
        %v236 = vld [vmem:[%s179 + $0xe0] sm:$0xff]
        %v237 = vld [vmem:[%s179 + $0xe8] sm:$0xff]
        %v238 = vld [vmem:[%s179 + $0xf0] sm:$0xff]
        %v239 = vld [vmem:[%s179 + $0xf8] sm:$0xff]
        %v244 = vunpack.c.l.b16 %v204
        %v245 = vunpack.c.h.b16 %v204
        %v246 = vunpack.c.l.b16 %v205
        %v247 = vunpack.c.h.b16 %v205
        %v248 = vunpack.c.l.b16 %v206
        %v249 = vunpack.c.h.b16 %v206
        %v250 = vunpack.c.l.b16 %v207
        %v251 = vunpack.c.h.b16 %v207
        %v252 = vpack.c.b16 %v246, %v244
        %v253 = vpack.c.b16 %v247, %v245
        %v254 = vpack.c.b16 %v250, %v248
        %v255 = vpack.c.b16 %v251, %v249
        %v292 = vunpack.c.l.b16 %v208
        %v293 = vunpack.c.h.b16 %v208
        %v294 = vunpack.c.l.b16 %v209
        %v295 = vunpack.c.h.b16 %v209
        %v296 = vunpack.c.l.b16 %v210
        %v297 = vunpack.c.h.b16 %v210
        %v298 = vunpack.c.l.b16 %v211
        %v299 = vunpack.c.h.b16 %v211
        %v300 = vunpack.c.l.b16 %v212
        %v301 = vunpack.c.h.b16 %v212
        %v302 = vunpack.c.l.b16 %v213
        %v303 = vunpack.c.h.b16 %v213
        %v304 = vunpack.c.l.b16 %v214
        %v305 = vunpack.c.h.b16 %v214
        %v306 = vunpack.c.l.b16 %v215
        %v307 = vunpack.c.h.b16 %v215
        %v308 = vunpack.c.l.b16 %v216
        %v309 = vunpack.c.h.b16 %v216
        %v310 = vunpack.c.l.b16 %v217
        %v311 = vunpack.c.h.b16 %v217
        %v312 = vunpack.c.l.b16 %v218
        %v313 = vunpack.c.h.b16 %v218
        %v314 = vunpack.c.l.b16 %v219
        %v315 = vunpack.c.h.b16 %v219
        %v316 = vunpack.c.l.b16 %v220
        %v317 = vunpack.c.h.b16 %v220
        %v318 = vunpack.c.l.b16 %v221
        %v319 = vunpack.c.h.b16 %v221
        %v320 = vunpack.c.l.b16 %v222
        %v321 = vunpack.c.h.b16 %v222
        %v322 = vunpack.c.l.b16 %v223
        %v323 = vunpack.c.h.b16 %v223
        %v324 = vunpack.c.l.b16 %v224
        %v325 = vunpack.c.h.b16 %v224
        %v326 = vunpack.c.l.b16 %v225
        %v327 = vunpack.c.h.b16 %v225
        %v328 = vunpack.c.l.b16 %v226
        %v329 = vunpack.c.h.b16 %v226
        %v330 = vunpack.c.l.b16 %v227
        %v331 = vunpack.c.h.b16 %v227
        %v332 = vunpack.c.l.b16 %v228
        %v333 = vunpack.c.h.b16 %v228
        %v334 = vunpack.c.l.b16 %v229
        %v335 = vunpack.c.h.b16 %v229
        %v336 = vunpack.c.l.b16 %v230
        %v337 = vunpack.c.h.b16 %v230
        %v338 = vunpack.c.l.b16 %v231
        %v339 = vunpack.c.h.b16 %v231
        %v340 = vunpack.c.l.b16 %v232
        %v341 = vunpack.c.h.b16 %v232
        %v342 = vunpack.c.l.b16 %v233
        %v343 = vunpack.c.h.b16 %v233
        %v344 = vunpack.c.l.b16 %v234
        %v345 = vunpack.c.h.b16 %v234
        %v346 = vunpack.c.l.b16 %v235
        %v347 = vunpack.c.h.b16 %v235
        %v348 = vunpack.c.l.b16 %v236
        %v349 = vunpack.c.h.b16 %v236
        %v350 = vunpack.c.l.b16 %v237
        %v351 = vunpack.c.h.b16 %v237
        %v352 = vunpack.c.l.b16 %v238
        %v353 = vunpack.c.h.b16 %v238
        %v354 = vunpack.c.l.b16 %v239
        %v355 = vunpack.c.h.b16 %v239
        %v356 = vpack.c.b16 %v294, %v292
        %v357 = vpack.c.b16 %v295, %v293
        %v358 = vpack.c.b16 %v298, %v296
        %v359 = vpack.c.b16 %v299, %v297
        %v360 = vpack.c.b16 %v302, %v300
        %v361 = vpack.c.b16 %v303, %v301
        %v362 = vpack.c.b16 %v306, %v304
        %v363 = vpack.c.b16 %v307, %v305
        %v364 = vpack.c.b16 %v310, %v308
        %v365 = vpack.c.b16 %v311, %v309
        %v366 = vpack.c.b16 %v314, %v312
        %v367 = vpack.c.b16 %v315, %v313
        %v368 = vpack.c.b16 %v318, %v316
        %v369 = vpack.c.b16 %v319, %v317
        %v370 = vpack.c.b16 %v322, %v320
        %v371 = vpack.c.b16 %v323, %v321
        %v372 = vpack.c.b16 %v326, %v324
        %v373 = vpack.c.b16 %v327, %v325
        %v374 = vpack.c.b16 %v330, %v328
        %v375 = vpack.c.b16 %v331, %v329
        %v376 = vpack.c.b16 %v334, %v332
        %v377 = vpack.c.b16 %v335, %v333
        %v378 = vpack.c.b16 %v338, %v336
        %v379 = vpack.c.b16 %v339, %v337
        %v380 = vpack.c.b16 %v342, %v340
        %v381 = vpack.c.b16 %v343, %v341
        %v382 = vpack.c.b16 %v346, %v344
        %v383 = vpack.c.b16 %v347, %v345
        %v384 = vpack.c.b16 %v350, %v348
        %v385 = vpack.c.b16 %v351, %v349
        %v386 = vpack.c.b16 %v354, %v352
        %v387 = vpack.c.b16 %v355, %v353
        %420 = vmatprep.subr.bf16.mxu0 %v371
        %421 = vmatpush1.bf16.msra.mxu0 %v370
        %422 = vmatprep.subr.bf16.mxu0 %v369
        %423 = vmatpush1.bf16.msra.mxu0 %v368
        %424 = vmatprep.subr.bf16.mxu0 %v367
        %425 = vmatpush1.bf16.msra.mxu0 %v366
        %426 = vmatprep.subr.bf16.mxu0 %v365
        %427 = vmatpush1.bf16.msra.mxu0 %v364
        %428 = vmatprep.subr.bf16.mxu0 %v363
        %429 = vmatpush1.bf16.msra.mxu0 %v362
        %430 = vmatprep.subr.bf16.mxu0 %v361
        %431 = vmatpush1.bf16.msra.mxu0 %v360
        %432 = vmatprep.subr.bf16.mxu0 %v359
        %433 = vmatpush1.bf16.msra.mxu0 %v358
        %434 = vmatprep.subr.bf16.mxu0 %v357
        %435 = vmatpush1.bf16.msra.mxu0 %v356
        %436 = vmatprep.subr.bf16.mxu0 %v387
        %437 = vmatpush2.bf16.msra.mxu0 %v386
        %438 = vmatprep.subr.bf16.mxu0 %v385
        %439 = vmatpush2.bf16.msra.mxu0 %v384
        %440 = vmatprep.subr.bf16.mxu0 %v383
        %441 = vmatpush2.bf16.msra.mxu0 %v382
        %442 = vmatprep.subr.bf16.mxu0 %v381
        %443 = vmatpush2.bf16.msra.mxu0 %v380
        %444 = vmatprep.subr.bf16.mxu0 %v379
        %445 = vmatpush2.bf16.msra.mxu0 %v378
        %446 = vmatprep.subr.bf16.mxu0 %v377
        %447 = vmatpush2.bf16.msra.mxu0 %v376
        %448 = vmatprep.subr.bf16.mxu0 %v375
        %449 = vmatpush2.bf16.msra.mxu0 %v374
        %450 = vmatprep.subr.bf16.mxu0 %v373
        %451 = vmatpush2.bf16.msra.mxu0 %v372
        %452 = vmatprep.mubr.bf16.mxu0 %v253
        %453 = vmatmul.mubr.bf16.gmra.mxu0 %v252
        %v454 = vpop.f32.mrf.mxu0
        %v455 = vadd.f32 0.0, %v454
        %v456 = vpop.f32.mrf.mxu0
        %v457 = vadd.f32 0.0, %v456
        %v458 = vpop.f32.mrf.mxu0
        %v459 = vadd.f32 0.0, %v458
        %v460 = vpop.f32.mrf.mxu0
        %v461 = vadd.f32 0.0, %v460
        %462 = vmatprep.mubr.bf16.mxu0 %v255
        %463 = vmatmul.mubr.bf16.gmra.mxu0 %v254
        %v464 = vpop.f32.mrf.mxu0
        %v465 = vadd.f32 0.0, %v464
        %v466 = vpop.f32.mrf.mxu0
        %v467 = vadd.f32 0.0, %v466
        %v468 = vpop.f32.mrf.mxu0
        %v469 = vadd.f32 0.0, %v468
        %v470 = vpop.f32.mrf.mxu0
        %v471 = vadd.f32 0.0, %v470
        %472 = vdwg.mxu0
        %473 = vst [vmem:[%s199] sm:$0xff] %v455
        %474 = vst [vmem:[%s199 + $0x8] sm:$0xff] %v457
        %475 = vst [vmem:[%s199 + $0x10] sm:$0xff] %v459
        %476 = vst [vmem:[%s199 + $0x18] sm:$0xff] %v461
        %477 = vst [vmem:[%s199 + $0x20] sm:$0xff] %v465
        %478 = vst [vmem:[%s199 + $0x28] sm:$0xff] %v467
        %479 = vst [vmem:[%s199 + $0x30] sm:$0xff] %v469
        %480 = vst [vmem:[%s199 + $0x38] sm:$0xff] %v471
        %s481 = sand.u32 %s94, 1
        %s482 = scalar_lea.sflag [#allocation4], %s481
        %s483 = sand.u32 %s94, 1
        %s484 = smul.addr %s483, 64
        %s485 = scalar_lea.vmem [#allocation7], %s484
        // Predicated region
        $region37: #{tpu_custom_call.1} parent=27 // pred_check
          %p486 = pneg %p104
        $region38: #{tpu_custom_call.1} parent=27 // pred_check_branch
          %488 = sbr.rel (%p486) target = $region40
        $region39: #{tpu_custom_call.1} parent=27 // pred_region
          %s489 = smul.u32 4, %s25
          %s490 = smul.u32 2, %s24
          %s492 = ssub.s32 1024, 1024
          %493 = vsyncadd %s482, %s492
          %s494 = smul.addr %s489, 4
          %s495 = sadd.s32 %s490, %s494
          %s496 = smul.addr %s495, 128
          %s497 = scalar_lea.hbm %s2, %s496
          %s498 = sshll.u32 %s485, 4
          %s499 = int_to_ptr.vmem [resolvable:$true] %s498
          %504 = dma.vmem_to_hbm [thread:$0]  %s499, 1024, %s497, %s482, 256, 512, 16
        $region40: #{tpu_custom_call.1} parent=27 // pred_fallthru
          _
      $region28: #{tpu_custom_call.1} parent=5 // pred_fallthru
        _
      %p505 = scmp.le.s32.totalorder 2, %s15
      // Predicated region
      $region41: #{tpu_custom_call.1} parent=5 // pred_check
        %p506 = pneg %p505
      $region42: #{tpu_custom_call.1} parent=5 // pred_check_branch
        %508 = sbr.rel (%p506) target = $region44
      $region43: #{tpu_custom_call.1} parent=5 // pred_region
        %s509 = ssub.s32 %s15, 2
        // Predicated region
        $region45: #{tpu_custom_call.1} parent=43 // pred_check
          %p510 = pneg %p110
        $region46: #{tpu_custom_call.1} parent=43 // pred_check_branch
          %512 = sbr.rel (%p510) target = $region48
        $region47: #{tpu_custom_call.1} parent=43 // pred_region
          %s513 = sand.u32 %s95, 1
          %s514 = scalar_lea.sflag [#allocation4], %s513
          %s515 = sand.u32 %s95, 1
          %s516 = smul.addr %s515, 64
          %s517 = scalar_lea.vmem [#allocation7], %s516
          %518 = dma.done %s514, 1024
        $region48: #{tpu_custom_call.1} parent=43 // pred_fallthru
          _
      $region44: #{tpu_custom_call.1} parent=5 // pred_fallthru
        _
    $region6: #{tpu_custom_call.1} parent=1 // loop_footer
      %s19 = sadd.s32 1, %s15
    $region7: #{tpu_custom_call.1} parent=1 // loop_footer_branch
      %14 = sbr.rel target = $region3
    $region8: #{tpu_custom_call.1} parent=1 // loop_exit
      _
    %519 = vsyncpa [#allocation3], 1
    %s520 = scalar_lea.sflag [#allocation3], 1
    %521 = vsyncpa %s520, 1
    %522 = vsyncpa [#allocation6], 1
    %s523 = scalar_lea.sflag [#allocation6], 1
    %524 = vsyncpa %s523, 1
    %525 = vsyncpa [#allocation4], 1
    %s526 = scalar_lea.sflag [#allocation4], 1
    %527 = vsyncpa %s526, 1

</llo_original>
